<compile_context>
chip_gen: v5e
topology: v5e:2x2
jax: 0.10.0
libtpu: 0.0.40
codegen_flags: <defaults>
</compile_context>

<pallas_src>
import jax
import jax.numpy as jnp
from jax.experimental import pallas as pl
from jax.experimental.pallas import tpu as pltpu


_NEG_PAD = -1e30  # effectively -inf for the padded category columns


def categorical_kernel(x_ref, w_ref, b_ref, logits_ref, probs_ref):
    # Linear: z = x @ W + b   (MXU matmul, f32 accumulation)
    z = jnp.dot(x_ref[...], w_ref[...], preferred_element_type=jnp.float32)
    z = z + b_ref[...]  # (TB, nout_p) + (1, nout_p) broadcast

    # Numerically-stable log-softmax / softmax along the category axis (-1).
    # Padded categories carry bias=-1e30 -> exp underflows to 0, so the
    # statistics over the real categories are exact.
    m = jnp.max(z, axis=-1, keepdims=True)
    e = jnp.exp(z - m)
    s = jnp.sum(e, axis=-1, keepdims=True)

    logits_ref[...] = (z - m) - jnp.log(s)  # normalized logits (log_softmax)
    probs_ref[...] = e / s                  # exact divide (meets 1e-5 tolerance)


def _round_up(x, m):
    return (x + m - 1) // m * m


def categorical_forward(x, w, b, *, tb=512):
    """x: (B, nin) f32, w: (nin, nout) f32 (= W^T of the PyTorch layer),
    b: (nout,) f32 -> (normalized_logits, probs), each (B, nout) f32."""
    B, nin = x.shape
    nout = w.shape[1]

    # Lane-dense category axis: pad to a multiple of 128.
    nout_p = _round_up(nout, 128)
    # Batch tile: multiple of 8 sublanes, ~512 rows when B is large.
    TB = min(tb, _round_up(B, 8))
    TB = _round_up(TB, 8)
    B_p = _round_up(B, TB)

    # Parameter / input padding (pad weight cols = 0, pad bias = -inf-ish).
    w_p = jnp.zeros((nin, nout_p), jnp.float32).at[:, :nout].set(w.astype(jnp.float32))
    b_p = (jnp.full((1, nout_p), _NEG_PAD, jnp.float32)
           .at[:, :nout].set(b.reshape(1, nout).astype(jnp.float32)))
    x_p = jnp.zeros((B_p, nin), jnp.float32).at[:B].set(x.astype(jnp.float32))

    grid = (B_p // TB,)

    logits_p, probs_p = pl.pallas_call(
        categorical_kernel,
        out_shape=(
            jax.ShapeDtypeStruct((B_p, nout_p), jnp.float32),
            jax.ShapeDtypeStruct((B_p, nout_p), jnp.float32),
        ),
        grid=grid,
        in_specs=[
            pl.BlockSpec((TB, nin), lambda i: (i, 0)),      # x tile, pipelined over B
            pl.BlockSpec((nin, nout_p), lambda i: (0, 0)),  # W resident across steps
            pl.BlockSpec((1, nout_p), lambda i: (0, 0)),    # b resident across steps
        ],
        out_specs=(
            pl.BlockSpec((TB, nout_p), lambda i: (i, 0)),
            pl.BlockSpec((TB, nout_p), lambda i: (i, 0)),
        ),
        compiler_params=pltpu.CompilerParams(
            # Batch tiles are independent -> shard across TCs on v7x megacore.
            dimension_semantics=("parallel",),
            # Default TB=512 with double-buffered x / logits / probs tiles plus a
            # resident W comfortably fits this, incl. v7x's smaller VMEM.
            vmem_limit_bytes=64 * 1024 * 1024,
        ),
    )(x_p, w_p, b_p)

    return logits_p[:B, :nout], probs_p[:B, :nout]


if __name__ == "__main__":
    key = jax.random.PRNGKey(0)
    kx, kw = jax.random.split(key)

    # Small shapes consistent with a Linear(nin, nout) head.
    B, nin, nout = 24, 32, 16

    x = jax.random.normal(kx, (B, nin), dtype=jnp.float32)

    # Module init is orthogonal_(gain=0.0) -> all-zero weight, zero bias
    # (degenerate uniform distribution).  Use deterministic non-trivial weights
    # so the matmul / softmax path is actually exercised; semantics identical.
    w = 0.1 * jax.random.normal(kw, (nin, nout), dtype=jnp.float32)  # (nin, nout) = W^T
    b = jnp.zeros((nout,), dtype=jnp.float32)

    # Small tb here to exercise the multi-step (pipelined) grid path; production
    # callers use the default tb=512.
    logits, probs = categorical_forward(x, w, b, tb=8)
    jax.block_until_ready((logits, probs))

    # Pure-JAX reference for the same semantics.
    z_ref = x @ w + b
    logits_ref = jax.nn.log_softmax(z_ref, axis=-1)
    probs_ref = jax.nn.softmax(z_ref, axis=-1)

    assert jnp.allclose(logits, logits_ref, atol=1e-5, rtol=1e-5)
    assert jnp.allclose(probs, probs_ref, atol=1e-5, rtol=1e-5)
    assert jnp.allclose(jnp.sum(probs, axis=-1), 1.0, atol=1e-5)

    print("KERNEL_OK")
</pallas_src>

<mosaic_0001>
module attributes {stable_mosaic.version = 11 : i64} {
  func.func @categorical_kernel(%arg0: i32, %arg1: memref<8x32xf32, #tpu.memory_space<vmem>>, %arg2: memref<32x128xf32, #tpu.memory_space<vmem>>, %arg3: memref<1x128xf32, #tpu.memory_space<vmem>>, %arg4: memref<8x128xf32, #tpu.memory_space<vmem>>, %arg5: memref<8x128xf32, #tpu.memory_space<vmem>>) attributes {dimension_semantics = [#tpu.dimension_semantics<parallel>], iteration_bounds = array<i64: 3>, scalar_prefetch = 0 : i64, scratch_operands = 0 : i64, tpu.core_type = #tpu.core_type<tc>, window_params = [{transform_indices = @transform_0, window_bounds = array<i64: 8, 32>}, {pipeline_mode = #tpu.pipeline_mode<synchronous>, transform_indices = @transform_1, window_bounds = array<i64: 32, 128>}, {pipeline_mode = #tpu.pipeline_mode<synchronous>, transform_indices = @transform_2, window_bounds = array<i64: 1, 128>}, {transform_indices = @transform_3, window_bounds = array<i64: 8, 128>}, {transform_indices = @transform_4, window_bounds = array<i64: 8, 128>}]} {
    %c0 = arith.constant 0 : index
    %c0_0 = arith.constant 0 : index
    %0 = vector.load %arg1[%c0, %c0_0] : memref<8x32xf32, #tpu.memory_space<vmem>>, vector<8x32xf32>
    %c0_1 = arith.constant 0 : index
    %c0_2 = arith.constant 0 : index
    %1 = vector.load %arg2[%c0_1, %c0_2] : memref<32x128xf32, #tpu.memory_space<vmem>>, vector<32x128xf32>
    %cst = arith.constant dense<0.000000e+00> : vector<8x128xf32>
    %2 = tpu.matmul %0, %1, %cst {dimension_numbers = #tpu.dot_dimension_numbers<[1], [0], [0], [1], [0, 0, 1, 1], [], []>} : vector<8x32xf32>, vector<32x128xf32>, vector<8x128xf32> -> vector<8x128xf32>
    %c0_3 = arith.constant 0 : index
    %c0_4 = arith.constant 0 : index
    %3 = vector.load %arg3[%c0_3, %c0_4] : memref<1x128xf32, #tpu.memory_space<vmem>>, vector<1x128xf32>
    %4 = vector.broadcast %3 : vector<1x128xf32> to vector<8x128xf32>
    %5 = arith.addf %2, %4 : vector<8x128xf32>
    %cst_5 = arith.constant dense<0xFF800000> : vector<8xf32>
    %6 = vector.multi_reduction <maximumf>, %5, %cst_5 [1] : vector<8x128xf32> to vector<8xf32>
    %7 = vector.shape_cast %6 : vector<8xf32> to vector<8x1xf32>
    %8 = vector.broadcast %7 : vector<8x1xf32> to vector<8x128xf32>
    %9 = arith.subf %5, %8 : vector<8x128xf32>
    %10 = math.exp %9 : vector<8x128xf32>
    %cst_6 = arith.constant dense<0.000000e+00> : vector<8xf32>
    %11 = vector.multi_reduction <add>, %10, %cst_6 [1] : vector<8x128xf32> to vector<8xf32>
    %12 = vector.shape_cast %11 : vector<8xf32> to vector<8x1xf32>
    %13 = vector.broadcast %7 : vector<8x1xf32> to vector<8x128xf32>
    %14 = arith.subf %5, %13 : vector<8x128xf32>
    %15 = math.log %12 : vector<8x1xf32>
    %16 = vector.broadcast %15 : vector<8x1xf32> to vector<8x128xf32>
    %17 = arith.subf %14, %16 : vector<8x128xf32>
    %c0_7 = arith.constant 0 : index
    %c0_8 = arith.constant 0 : index
    %18 = vector.load %arg4[%c0_7, %c0_8] : memref<8x128xf32, #tpu.memory_space<vmem>>, vector<8x128xf32>
    tpu.vector_store %arg4[%c0_7, %c0_8], %17 {strides = array<i32>} : memref<8x128xf32, #tpu.memory_space<vmem>>, vector<8x128xf32>,
    %19 = vector.broadcast %12 : vector<8x1xf32> to vector<8x128xf32>
    %20 = arith.divf %10, %19 : vector<8x128xf32>
    %c0_9 = arith.constant 0 : index
    %c0_10 = arith.constant 0 : index
    %21 = vector.load %arg5[%c0_9, %c0_10] : memref<8x128xf32, #tpu.memory_space<vmem>>, vector<8x128xf32>
    tpu.vector_store %arg5[%c0_9, %c0_10], %20 {strides = array<i32>} : memref<8x128xf32, #tpu.memory_space<vmem>>, vector<8x128xf32>,
    return
  }
  func.func @transform_0(%arg0: i32) -> (i32, i32) {
    %c0_i32 = arith.constant 0 : i32
    %c0_i32_0 = arith.constant 0 : i32
    return %arg0, %c0_i32 : i32, i32
  }
  func.func @transform_1(%arg0: i32) -> (i32, i32) {
    %c0_i32 = arith.constant 0 : i32
    %c0_i32_0 = arith.constant 0 : i32
    %c0_i32_1 = arith.constant 0 : i32
    return %c0_i32, %c0_i32_0 : i32, i32
  }
  func.func @transform_2(%arg0: i32) -> (i32, i32) {
    %c0_i32 = arith.constant 0 : i32
    %c0_i32_0 = arith.constant 0 : i32
    %c0_i32_1 = arith.constant 0 : i32
    return %c0_i32, %c0_i32_0 : i32, i32
  }
  func.func @transform_3(%arg0: i32) -> (i32, i32) {
    %c0_i32 = arith.constant 0 : i32
    %c0_i32_0 = arith.constant 0 : i32
    return %arg0, %c0_i32 : i32, i32
  }
  func.func @transform_4(%arg0: i32) -> (i32, i32) {
    %c0_i32 = arith.constant 0 : i32
    %c0_i32_0 = arith.constant 0 : i32
    return %arg0, %c0_i32 : i32, i32
  }
}

</mosaic_0001>

<llo_original>
// kernel: tpu_custom_call.1
$region0: #{tpu_custom_call.1}
  #allocation0 [shape = 'u32[]', space=smem, size = 0x4, offset = 0x4, fixed_abs, tag = 'smem constant byte address 0x4 - core index']
  #allocation1 [shape = 'u32[72,128]{1,0:T(1,128)}', space=vmem, size = 0x9000, scoped, tag = 'internal scratch']
  %s0 = inlined_call_operand.hbm [shape: f32[24,32], index: 0, kind: input, shape index: {}]
  %s1 = inlined_call_operand.hbm [shape: f32[32,128], index: 1, kind: input, shape index: {}]
  %s2 = inlined_call_operand.vmem [shape: f32[1,128], index: 2, kind: input, shape index: {}]
  %s3 = inlined_call_operand.hbm [shape: f32[24,128], index: 3, kind: output, shape index: {0}]
  %s4 = inlined_call_operand.hbm [shape: f32[24,128], index: 4, kind: output, shape index: {1}]
  %5 = xla_tuple %s3, %s4
  %s6 = sld [smem:[#allocation0]]
  $region61: #{tpu_custom_call.1} parent=0
    _
  %s8 = ssub.s32 1, %s6
  %s9 = scalar_select 0, %s8, %s6
  $region1: #{tpu_custom_call.1} parent=0
    #allocation2 [shape = 'u8[8192]{0}', space=vmem, size = 0x2000, scoped, tag = 'input window, operand 0']
    #allocation3 [shape = 's32[2]{0}', space=sflag, size = 0x8, scoped, tag = 'scoped memory for tpu_custom_call.1']
    #allocation4 [shape = 's32[2]{0}', space=sflag, size = 0x8, scoped, tag = 'scoped memory for tpu_custom_call.1']
    #allocation5 [shape = 'u8[16384]{0}', space=vmem, size = 0x4000, scoped, tag = 'input window, operand 1, single buffered']
    #allocation6 [shape = 's32[1]{0}', space=sflag, size = 0x4, scoped, tag = 'scoped memory for tpu_custom_call.1']
    #allocation7 [shape = 'u8[8192]{0}', space=vmem, size = 0x2000, scoped, tag = 'output window, operand 0']
    #allocation8 [shape = 'u8[8192]{0}', space=vmem, size = 0x2000, scoped, tag = 'output window, operand 1']
    #allocation9 [shape = 's32[2]{0}', space=sflag, size = 0x8, scoped, tag = 'scoped memory for tpu_custom_call.1']
    %10 = vsyncpa [#allocation3], 0
    %s11 = scalar_lea.sflag [#allocation3], 1
    %12 = vsyncpa %s11, 0
    %13 = vsyncpa [#allocation6], 0
    %14 = vsyncpa [#allocation4], 0
    %s15 = scalar_lea.sflag [#allocation4], 1
    %16 = vsyncpa %s15, 0
    %17 = vsyncpa [#allocation9], 0
    %s18 = scalar_lea.sflag [#allocation9], 1
    %19 = vsyncpa %s18, 0
    loop: start=0, step=1, limit=5
    $region2: #{tpu_custom_call.1} parent=1 // loop_pre_header
      _
    $region3: #{tpu_custom_call.1} parent=1 // loop_header
      %s21 = sphi 0, %s25
      %p22 = scmp.ge.s32.totalorder %s21, 5
      %s31 = sphi 0, %s33
      %s34 = sphi 0, %s31
      %s35 = sphi 0, %s34
      %s51 = sphi 0, %s35
      %s55 = sphi 0, %s55
      %s57 = sphi 0, %s55
      %s58 = sphi 0, %s57
      %s72 = sphi 0, %s58
      %s76 = sphi 0, %s76
      %s78 = sphi 0, %s76
      %s79 = sphi 0, %s78
      %s93 = sphi 0, %s79
      %s99 = sphi 0, %s101
      %s102 = sphi 0, %s99
      %s103 = sphi 0, %s102
      %s119 = sphi 0, %s103
      %s125 = sphi 0, %s127
      %s128 = sphi 0, %s125
      %s129 = sphi 0, %s128
      %s145 = sphi 0, %s129
    $region4: #{tpu_custom_call.1} parent=1 // loop_header_branch
      %24 = sbr.rel (%p22) target = $region8
    $region5: #{tpu_custom_call.1} parent=1 // loop_body
      %s26 = ssub.s32 %s21, 1
      %s27 = ssub.s32 %s21, 2
      %s28 = sadd.s32 %s21, 1
      %s29 = ssub.s32 %s21, %s28
      %p30 = scmp.eq.s32.totalorder %s29, 0
      %s32 = sadd.s32 %s31, 1
      %s33 = scalar_select %p30, %s31, %s32
      %p36 = pneg %p30
      %p37 = scmp.eq.s32.totalorder %s21, 2
      %p38 = por %p36, %p37
      %p39 = scmp.ne.s32.totalorder %s31, %s34
      %p40 = scmp.eq.s32.totalorder %s21, 0
      %p41 = por %p39, %p40
      %p42 = scmp.ne.s32.totalorder %s31, %s34
      %p43 = scmp.eq.s32.totalorder %s26, 2
      %p44 = por %p42, %p43
      %p45 = scmp.ne.s32.totalorder %s34, %s35
      %p46 = scmp.eq.s32.totalorder %s26, 0
      %p47 = por %p45, %p46
      %p48 = scmp.ne.s32.totalorder %s34, %s35
      %p49 = scmp.eq.s32.totalorder %s27, 2
      %p50 = por %p48, %p49
      %p52 = scmp.ne.s32.totalorder %s35, %s51
      %p53 = scmp.eq.s32.totalorder %s27, 0
      %p54 = por %p52, %p53
      %s56 = sadd.s32 %s55, 1
      %p59 = scmp.eq.s32.totalorder %s21, 2
      %p60 = scmp.ne.s32.totalorder %s55, %s57
      %p61 = scmp.eq.s32.totalorder %s21, 0
      %p62 = por %p60, %p61
      %p63 = scmp.ne.s32.totalorder %s55, %s57
      %p64 = scmp.eq.s32.totalorder %s26, 2
      %p65 = por %p63, %p64
      %p66 = scmp.ne.s32.totalorder %s57, %s58
      %p67 = scmp.eq.s32.totalorder %s26, 0
      %p68 = por %p66, %p67
      %p69 = scmp.ne.s32.totalorder %s57, %s58
      %p70 = scmp.eq.s32.totalorder %s27, 2
      %p71 = por %p69, %p70
      %p73 = scmp.ne.s32.totalorder %s58, %s72
      %p74 = scmp.eq.s32.totalorder %s27, 0
      %p75 = por %p73, %p74
      %s77 = sadd.s32 %s76, 1
      %p80 = scmp.eq.s32.totalorder %s21, 2
      %p81 = scmp.ne.s32.totalorder %s76, %s78
      %p82 = scmp.eq.s32.totalorder %s21, 0
      %p83 = por %p81, %p82
      %p84 = scmp.ne.s32.totalorder %s76, %s78
      %p85 = scmp.eq.s32.totalorder %s26, 2
      %p86 = por %p84, %p85
      %p87 = scmp.ne.s32.totalorder %s78, %s79
      %p88 = scmp.eq.s32.totalorder %s26, 0
      %p89 = por %p87, %p88
      %p90 = scmp.ne.s32.totalorder %s78, %s79
      %p91 = scmp.eq.s32.totalorder %s27, 2
      %p92 = por %p90, %p91
      %p94 = scmp.ne.s32.totalorder %s79, %s93
      %p95 = scmp.eq.s32.totalorder %s27, 0
      %p96 = por %p94, %p95
      %s97 = ssub.s32 %s21, %s28
      %p98 = scmp.eq.s32.totalorder %s97, 0
      %s100 = sadd.s32 %s99, 1
      %s101 = scalar_select %p98, %s99, %s100
      %p104 = pneg %p98
      %p105 = scmp.eq.s32.totalorder %s21, 2
      %p106 = por %p104, %p105
      %p107 = scmp.ne.s32.totalorder %s99, %s102
      %p108 = scmp.eq.s32.totalorder %s21, 0
      %p109 = por %p107, %p108
      %p110 = scmp.ne.s32.totalorder %s99, %s102
      %p111 = scmp.eq.s32.totalorder %s26, 2
      %p112 = por %p110, %p111
      %p113 = scmp.ne.s32.totalorder %s102, %s103
      %p114 = scmp.eq.s32.totalorder %s26, 0
      %p115 = por %p113, %p114
      %p116 = scmp.ne.s32.totalorder %s102, %s103
      %p117 = scmp.eq.s32.totalorder %s27, 2
      %p118 = por %p116, %p117
      %p120 = scmp.ne.s32.totalorder %s103, %s119
      %p121 = scmp.eq.s32.totalorder %s27, 0
      %p122 = por %p120, %p121
      %s123 = ssub.s32 %s21, %s28
      %p124 = scmp.eq.s32.totalorder %s123, 0
      %s126 = sadd.s32 %s125, 1
      %s127 = scalar_select %p124, %s125, %s126
      %p130 = pneg %p124
      %p131 = scmp.eq.s32.totalorder %s21, 2
      %p132 = por %p130, %p131
      %p133 = scmp.ne.s32.totalorder %s125, %s128
      %p134 = scmp.eq.s32.totalorder %s21, 0
      %p135 = por %p133, %p134
      %p136 = scmp.ne.s32.totalorder %s125, %s128
      %p137 = scmp.eq.s32.totalorder %s26, 2
      %p138 = por %p136, %p137
      %p139 = scmp.ne.s32.totalorder %s128, %s129
      %p140 = scmp.eq.s32.totalorder %s26, 0
      %p141 = por %p139, %p140
      %p142 = scmp.ne.s32.totalorder %s128, %s129
      %p143 = scmp.eq.s32.totalorder %s27, 2
      %p144 = por %p142, %p143
      %p146 = scmp.ne.s32.totalorder %s129, %s145
      %p147 = scmp.eq.s32.totalorder %s27, 0
      %p148 = por %p146, %p147
      %p149 = scmp.le.s32.totalorder 1, %s21
      %p150 = scmp.lt.s32.totalorder %s21, 4
      %p151 = pnand %p149, %p150
      %p152 = pneg %p151
      // Predicated region
      $region9: #{tpu_custom_call.1} parent=5 // pred_check
        _
      $region10: #{tpu_custom_call.1} parent=5 // pred_check_branch
        %154 = sbr.rel (%p151) target = $region12
      $region11: #{tpu_custom_call.1} parent=5 // pred_region
        %s155 = ssub.s32 %s21, 1
        // Predicated region
        $region13: #{tpu_custom_call.1} parent=11 // pred_check
          %p156 = pneg %p68
        $region14: #{tpu_custom_call.1} parent=11 // pred_check_branch
          %158 = sbr.rel (%p156) target = $region16
        $region15: #{tpu_custom_call.1} parent=11 // pred_region
          %160 = vsyncadd [#allocation6], 0
          %s161 = sshll.u32 %s1, 4
          %s162 = int_to_ptr.hbm [resolvable:$true] %s161
          %s163 = sshll.u32 [#allocation5], 4
          %s164 = int_to_ptr.vmem [resolvable:$true] %s163
          %169 = dma.hbm_to_vmem [thread:$0]  %s162, 512, %s164, [#allocation6], 128, 128, 8
        $region16: #{tpu_custom_call.1} parent=11 // pred_fallthru
          _
        // Predicated region
        $region17: #{tpu_custom_call.1} parent=11 // pred_check
          %p170 = pneg %p89
        $region18: #{tpu_custom_call.1} parent=11 // pred_check_branch
          %172 = sbr.rel (%p170) target = $region20
        $region19: #{tpu_custom_call.1} parent=11 // pred_region
          _
        $region20: #{tpu_custom_call.1} parent=11 // pred_fallthru
          _
      $region12: #{tpu_custom_call.1} parent=5 // pred_fallthru
        _
      %p173 = scmp.lt.s32.totalorder %s21, 3
      // Predicated region
      $region21: #{tpu_custom_call.1} parent=5 // pred_check
        %p174 = pneg %p173
      $region22: #{tpu_custom_call.1} parent=5 // pred_check_branch
        %176 = sbr.rel (%p174) target = $region24
      $region23: #{tpu_custom_call.1} parent=5 // pred_region
        // Predicated region
        $region25: #{tpu_custom_call.1} parent=23 // pred_check
          %p177 = pneg %p41
        $region26: #{tpu_custom_call.1} parent=23 // pred_check_branch
          %179 = sbr.rel (%p177) target = $region28
        $region27: #{tpu_custom_call.1} parent=23 // pred_region
          %s180 = sand.u32 %s31, 1
          %s181 = scalar_lea.sflag [#allocation3], %s180
          %s182 = sand.u32 %s31, 1
          %s183 = smul.addr %s182, 8
          %s184 = scalar_lea.vmem [#allocation2], %s183
          %186 = vsyncadd %s181, 0
          %s187 = smul.addr %s21, 8
          %s188 = scalar_lea.hbm %s0, %s187
          %s190 = sshll.u32 %s188, 4
          %s191 = int_to_ptr.hbm [resolvable:$true] %s190
          %s192 = sshll.u32 %s184, 4
          %s193 = int_to_ptr.vmem [resolvable:$true] %s192
          %195 = dma.hbm_to_vmem [thread:$0]  %s191, 128, %s193, %s181
        $region28: #{tpu_custom_call.1} parent=23 // pred_fallthru
          _
      $region24: #{tpu_custom_call.1} parent=5 // pred_fallthru
        _
      %p196 = scmp.le.s32.totalorder 1, %s21
      %p197 = scmp.lt.s32.totalorder %s21, 4
      %p198 = pnand %p196, %p197
      %p199 = pneg %p198
      // Predicated region
      $region29: #{tpu_custom_call.1} parent=5 // pred_check
        _
      $region30: #{tpu_custom_call.1} parent=5 // pred_check_branch
        %201 = sbr.rel (%p198) target = $region32
      $region31: #{tpu_custom_call.1} parent=5 // pred_region
        %s202 = ssub.s32 %s21, 1
        %s203 = sand.u32 %s34, 1
        %s204 = scalar_lea.sflag [#allocation3], %s203
        %s205 = sand.u32 %s34, 1
        %s206 = smul.addr %s205, 8
        %s207 = scalar_lea.vmem [#allocation2], %s206
        // Predicated region
        $region33: #{tpu_custom_call.1} parent=31 // pred_check
          %p208 = pneg %p47
        $region34: #{tpu_custom_call.1} parent=31 // pred_check_branch
          %210 = sbr.rel (%p208) target = $region36
        $region35: #{tpu_custom_call.1} parent=31 // pred_region
          %212 = dma.done %s204, 128
        $region36: #{tpu_custom_call.1} parent=31 // pred_fallthru
          _
        // Predicated region
        $region37: #{tpu_custom_call.1} parent=31 // pred_check
          %p213 = pneg %p68
        $region38: #{tpu_custom_call.1} parent=31 // pred_check_branch
          %215 = sbr.rel (%p213) target = $region40
        $region39: #{tpu_custom_call.1} parent=31 // pred_region
          %217 = dma.done [#allocation6], 512
        $region40: #{tpu_custom_call.1} parent=31 // pred_fallthru
          _
        %s218 = sand.u32 %s34, 1
        %s219 = scalar_lea.sflag [#allocation3], %s218
        %s220 = sand.u32 %s34, 1
        %s221 = smul.addr %s220, 8
        %s222 = scalar_lea.vmem [#allocation2], %s221
        %p223 = pneg %p47
        %p224 = pneg %p44
        %p225 = pneg %p68
        %p226 = pneg %p65
        %p227 = pneg %p89
        %p228 = pneg %p86
        %p229 = pneg %p115
        %p230 = pneg %p112
        %s231 = sand.u32 %s102, 1
        %s232 = scalar_lea.sflag [#allocation4], %s231
        %s233 = sand.u32 %s102, 1
        %s234 = smul.addr %s233, 8
        %s235 = scalar_lea.vmem [#allocation7], %s234
        %p236 = pneg %p141
        %p237 = pneg %p138
        %s238 = sand.u32 %s128, 1
        %s239 = scalar_lea.sflag [#allocation9], %s238
        %s240 = sand.u32 %s128, 1
        %s241 = smul.addr %s240, 8
        %s242 = scalar_lea.vmem [#allocation8], %s241
        %v243 = vld [vmem:[%s207] sm:$0xff]
        %v244 = vld [vmem:[#allocation5] sm:$0xff]
        %v245 = vld [vmem:[#allocation5 + $0x8] sm:$0xff]
        %v246 = vld [vmem:[#allocation5 + $0x10] sm:$0xff]
        %v247 = vld [vmem:[#allocation5 + $0x18] sm:$0xff]
        %v248 = vld [vmem:[%s2] sm:$0x1]
        %v250 = vperm.slane %v248, 0
        %vm252 = vcmask 261120
        %v254 = vsel %vm252, %v243, 0
        %256 = vmatpush.msra.mxu0 0.0
        %257 = vmatpush.msra.mxu0 0.0
        %258 = vmatpush.msra.mxu0 0.0
        %259 = vmatpush.msra.mxu0 0.0
        %260 = vmatpush.msra.mxu0 0.0
        %261 = vmatpush.msra.mxu0 0.0
        %262 = vmatpush.msra.mxu0 0.0
        %263 = vmatpush.msra.mxu0 0.0
        %264 = vmatpush.msra.mxu0 0.0
        %265 = vmatpush.msra.mxu0 0.0
        %266 = vmatpush.msra.mxu0 0.0
        %267 = vmatpush.msra.mxu0 0.0
        %268 = vmatpush.msra.mxu0 %v247
        %269 = vmatpush.msra.mxu0 %v246
        %270 = vmatpush.msra.mxu0 %v245
        %271 = vmatpush.msra.mxu0 %v244
        %272 = vmatmul.f32.gmra.mxu0 %v254
        %v273 = vpop.f32.mrf.mxu0
        %v274 = vadd.f32 %v250, %v273
        %275 = vdwg.mxu0
        %276 = vmax.xlane.f32.xlu0 %v274
        %v277 = vpop.xlane.xlu0 %276
        %v278 = vsub.f32 %v274, %v277
        %v279 = vmul.f32 %v278, 1.442695
        %v280 = vpow.pop %v279
        %281 = vadd.xlane.f32.xlu0 %v280
        %v282 = vpop.xlane.xlu0 %281
        %v283 = vlog2.pop %v282
        %v284 = vmul.f32 %v283, 0.6931472
        %v285 = vsub.f32 %v278, %v284
        %286 = vst [vmem:[%s235] sm:$0xff] %v285
        %v287 = vrcp.pop %v282
        %v288 = vmul.f32 %v282, %v287
        %v289 = vsub.f32 1.0, %v288
        %v290 = vmul.f32 %v287, %v289
        %v291 = vadd.f32 %v287, %v290
        %vm292 = vweird.f32 %v282
        %vm293 = vweird.f32 %v287
        %vm294 = vmor %vm292, %vm293
        %v295 = vsel %vm294, %v287, %v291
        %v296 = vand.u32 2147483647, %v282
        %vm297 = vcmp.eq.f32.partialorder %v296, 8.507059e+37
        %v298 = vand.u32 %v282, 2147483648
        %v299 = vor.u32 1.1754944e-38, %v298
        %v300 = vsel %vm297, %v299, %v295
        %v301 = vmul.f32 %v280, %v300
        %302 = vst [vmem:[%s242] sm:$0xff] %v301
        %s303 = sand.u32 %s102, 1
        %s304 = scalar_lea.sflag [#allocation4], %s303
        %s305 = sand.u32 %s102, 1
        %s306 = smul.addr %s305, 8
        %s307 = scalar_lea.vmem [#allocation7], %s306
        %s308 = sand.u32 %s128, 1
        %s309 = scalar_lea.sflag [#allocation9], %s308
        %s310 = sand.u32 %s128, 1
        %s311 = smul.addr %s310, 8
        %s312 = scalar_lea.vmem [#allocation8], %s311
        // Predicated region
        $region41: #{tpu_custom_call.1} parent=31 // pred_check
          %p313 = pneg %p112
        $region42: #{tpu_custom_call.1} parent=31 // pred_check_branch
          %315 = sbr.rel (%p313) target = $region44
        $region43: #{tpu_custom_call.1} parent=31 // pred_region
          %317 = vsyncadd %s304, 0
          %s318 = smul.addr %s26, 8
          %s319 = scalar_lea.hbm %s3, %s318
          %s321 = sshll.u32 %s307, 4
          %s322 = int_to_ptr.vmem [resolvable:$true] %s321
          %s323 = sshll.u32 %s319, 4
          %s324 = int_to_ptr.hbm [resolvable:$true] %s323
          %326 = dma.vmem_to_hbm [thread:$0]  %s322, 128, %s324, %s304
        $region44: #{tpu_custom_call.1} parent=31 // pred_fallthru
          _
        // Predicated region
        $region45: #{tpu_custom_call.1} parent=31 // pred_check
          %p327 = pneg %p138
        $region46: #{tpu_custom_call.1} parent=31 // pred_check_branch
          %329 = sbr.rel (%p327) target = $region48
        $region47: #{tpu_custom_call.1} parent=31 // pred_region
          %331 = vsyncadd %s309, 0
          %s332 = smul.addr %s26, 8
          %s333 = scalar_lea.hbm %s4, %s332
          %s335 = sshll.u32 %s312, 4
          %s336 = int_to_ptr.vmem [resolvable:$true] %s335
          %s337 = sshll.u32 %s333, 4
          %s338 = int_to_ptr.hbm [resolvable:$true] %s337
          %340 = dma.vmem_to_hbm [thread:$0]  %s336, 128, %s338, %s309
        $region48: #{tpu_custom_call.1} parent=31 // pred_fallthru
          _
      $region32: #{tpu_custom_call.1} parent=5 // pred_fallthru
        _
      %p341 = scmp.le.s32.totalorder 2, %s21
      // Predicated region
      $region49: #{tpu_custom_call.1} parent=5 // pred_check
        %p342 = pneg %p341
      $region50: #{tpu_custom_call.1} parent=5 // pred_check_branch
        %344 = sbr.rel (%p342) target = $region52
      $region51: #{tpu_custom_call.1} parent=5 // pred_region
        %s345 = ssub.s32 %s21, 2
        // Predicated region
        $region53: #{tpu_custom_call.1} parent=51 // pred_check
          %p346 = pneg %p118
        $region54: #{tpu_custom_call.1} parent=51 // pred_check_branch
          %348 = sbr.rel (%p346) target = $region56
        $region55: #{tpu_custom_call.1} parent=51 // pred_region
          %s349 = sand.u32 %s103, 1
          %s350 = scalar_lea.sflag [#allocation4], %s349
          %s351 = sand.u32 %s103, 1
          %s352 = smul.addr %s351, 8
          %s353 = scalar_lea.vmem [#allocation7], %s352
          %355 = dma.done %s350, 128
        $region56: #{tpu_custom_call.1} parent=51 // pred_fallthru
          _
        // Predicated region
        $region57: #{tpu_custom_call.1} parent=51 // pred_check
          %p356 = pneg %p144
        $region58: #{tpu_custom_call.1} parent=51 // pred_check_branch
          %358 = sbr.rel (%p356) target = $region60
        $region59: #{tpu_custom_call.1} parent=51 // pred_region
          %s359 = sand.u32 %s129, 1
          %s360 = scalar_lea.sflag [#allocation9], %s359
          %s361 = sand.u32 %s129, 1
          %s362 = smul.addr %s361, 8
          %s363 = scalar_lea.vmem [#allocation8], %s362
          %365 = dma.done %s360, 128
        $region60: #{tpu_custom_call.1} parent=51 // pred_fallthru
          _
      $region52: #{tpu_custom_call.1} parent=5 // pred_fallthru
        _
    $region6: #{tpu_custom_call.1} parent=1 // loop_footer
      %s25 = sadd.s32 1, %s21
    $region7: #{tpu_custom_call.1} parent=1 // loop_footer_branch
      %20 = sbr.rel target = $region3
    $region8: #{tpu_custom_call.1} parent=1 // loop_exit
      _
    %366 = vsyncpa [#allocation3], 1
    %s367 = scalar_lea.sflag [#allocation3], 1
    %368 = vsyncpa %s367, 1
    %369 = vsyncpa [#allocation6], 1
    %370 = vsyncpa [#allocation4], 1
    %s371 = scalar_lea.sflag [#allocation4], 1
    %372 = vsyncpa %s371, 1
    %373 = vsyncpa [#allocation9], 1
    %s374 = scalar_lea.sflag [#allocation9], 1
    %375 = vsyncpa %s374, 1

</llo_original>
